<compile_context>
chip_gen: v7x
topology: tpu7x:2x2x1
jax: 0.10.0
libtpu: 0.0.40
codegen_flags: <defaults>
</compile_context>

<pallas_src>
import functools

import jax
import jax.numpy as jnp
from jax import lax
from jax.experimental import pallas as pl
from jax.experimental.pallas import tpu as pltpu


def _lgnn_core_kernel(
    feat_a_ref, feat_b_ref, deg_ref, pm_pd_ref, adj_ref,
    w_all_ref, b_all_ref, gamma_ref, beta_ref,
    out_ref,
    *, radius: int, out_feats: int, hop_dtype,
):
    f32 = jnp.float32
    fa = feat_a_ref[0]                                     # [N, Fin]  f32
    adj = adj_ref[0]                                       # [N, N]    hop_dtype

    # fuse operand: pm_pd @ feat_b
    mixed = jnp.dot(pm_pd_ref[0], feat_b_ref[0], preferred_element_type=f32)

    # aggregate_radius: z_0 = A z ; z_k = A^(2^k) z for k >= 1.
    # Hop chain runs as bf16 x bf16 -> f32 accumulation on the MXU
    # (adj is exactly 0/1 so its bf16 cast is lossless).
    z = jnp.dot(adj, fa.astype(hop_dtype), preferred_element_type=f32)
    hops = [z]
    for i in range(radius - 1):                            # static unroll
        for _ in range(2 ** i):
            z = jnp.dot(adj, z.astype(hop_dtype), preferred_element_type=f32)
        hops.append(z)

    # One fused projection matmul: K = (3 + radius) * Fin instead of five
    # tiny K = Fin matmuls; the single pre-summed bias is added once.
    x = jnp.concatenate([fa, deg_ref[0] * fa] + hops + [mixed], axis=1)
    result = (
        jnp.dot(x, w_all_ref[...], preferred_element_type=f32) + b_all_ref[...]
    )                                                      # [N, Fout]

    # result = cat([result[:, :n], relu(result[:, n:])], 1), n = Fout // 2
    # implemented as a lane mask to stay lane-dense.
    n = out_feats // 2
    col = lax.broadcasted_iota(jnp.int32, result.shape, dimension=1)
    result = jnp.where(col >= n, jnp.maximum(result, 0.0), result)

    # BatchNorm1d, training mode: biased batch statistics over this graph's
    # node axis (matches PyTorch .train(); eval-mode running stats not modeled).
    mean = jnp.mean(result, axis=0, keepdims=True)
    var = jnp.mean((result - mean) ** 2, axis=0, keepdims=True)
    normed = (result - mean) * lax.rsqrt(var + 1e-5)
    out_ref[0] = normed * gamma_ref[...] + beta_ref[...]


def _vmem_limit_bytes(N, M, in_feats, out_feats, radius, hop_dtype):
    """Scoped-VMEM request sized from the actual buffers (adj dominates)."""
    f32 = 4
    hop = jnp.dtype(hop_dtype).itemsize
    per_graph = (
        N * in_feats * f32          # feat_a block
        + M * in_feats * f32        # feat_b block
        + N * f32                   # deg block
        + N * M * f32               # pm_pd block
        + N * N * hop               # adj block (largest buffer)
        + N * out_feats * f32       # out block
    )
    weights = ((3 + radius) * in_feats * out_feats + 3 * out_feats) * f32
    live = N * ((3 + radius) * in_feats + 4 * out_feats) * f32  # x, result, temps
    needed = 2 * (per_graph + weights) + live + (2 << 20)       # 2x: double buffer
    # clamp: >= default scoped limits (16/32 MiB), <= v7x physical VMEM (64 MiB)
    return int(min(max(needed, 32 << 20), 64 << 20))


def lgnn_core_forward(feat_a, feat_b, deg, pm_pd, adj, params, *,
                      radius, out_feats, hop_dtype=jnp.bfloat16):
    """LGNNCore forward. Inputs may be single-graph 2-D ([N, ...]) or batched
    3-D ([B, N, ...]); each graph is processed independently (same module
    applied B times), with the batch axis as a 'parallel' grid dimension."""
    single = feat_a.ndim == 2
    if single:
        feat_a, feat_b, deg, pm_pd, adj = (
            x[None] for x in (feat_a, feat_b, deg, pm_pd, adj))

    B, N, in_feats = feat_a.shape
    M = feat_b.shape[1]

    # Pre-stack the five projection weights and pre-sum the biases (once,
    # outside the kernel).  Order must match the in-kernel concat:
    # [fa, deg*fa, z_0, ..., z_{radius-1}, pm_pd @ feat_b].
    w_all = jnp.concatenate(
        [params["w_prev"], params["w_deg"]]
        + [params["w_rad"][i] for i in range(radius)]
        + [params["w_fuse"]],
        axis=0,
    )                                                   # [(3+radius)*Fin, Fout]
    b_all = (params["b_prev"] + params["b_deg"]
             + jnp.sum(params["b_rad"], axis=0) + params["b_fuse"])  # [1, Fout]

    adj = adj.astype(hop_dtype)     # 0/1 adjacency: lossless bf16, half VMEM

    def graph_spec(*shape):         # per-graph block along the batch grid axis
        return pl.BlockSpec((1,) + shape, lambda b: (b,) + (0,) * len(shape))

    def shared_spec(arr):           # same full block at every grid step
        return pl.BlockSpec(arr.shape, lambda b: (0,) * arr.ndim)

    kernel = functools.partial(
        _lgnn_core_kernel, radius=radius, out_feats=out_feats,
        hop_dtype=hop_dtype)

    out = pl.pallas_call(
        kernel,
        grid=(B,),
        out_shape=jax.ShapeDtypeStruct((B, N, out_feats), jnp.float32),
        in_specs=[
            graph_spec(N, in_feats),    # feat_a
            graph_spec(M, in_feats),    # feat_b
            graph_spec(N, 1),           # deg
            graph_spec(N, M),           # pm_pd
            graph_spec(N, N),           # adj
            shared_spec(w_all),
            shared_spec(b_all),
            shared_spec(params["gamma"]),
            shared_spec(params["beta"]),
        ],
        out_specs=graph_spec(N, out_feats),
        compiler_params=pltpu.CompilerParams(
            dimension_semantics=("parallel",),   # both TCs on v7x
            vmem_limit_bytes=_vmem_limit_bytes(
                N, M, in_feats, out_feats, radius, hop_dtype),
        ),
    )(feat_a, feat_b, deg, pm_pd, adj,
      w_all, b_all, params["gamma"], params["beta"])

    return out[0] if single else out


def lgnn_core_reference(feat_a, feat_b, deg, pm_pd, adj, params, *,
                        radius, out_feats, hop_dtype=jnp.bfloat16):
    """Pure-JAX single-graph reference mirroring the kernel numerics."""
    f32 = jnp.float32
    prev_proj = feat_a @ params["w_prev"] + params["b_prev"]
    deg_proj = (deg * feat_a) @ params["w_deg"] + params["b_deg"]
    a = adj.astype(hop_dtype)
    z = jnp.dot(a, feat_a.astype(hop_dtype), preferred_element_type=f32)
    radius_proj = z @ params["w_rad"][0] + params["b_rad"][0]
    for i in range(radius - 1):
        for _ in range(2 ** i):
            z = jnp.dot(a, z.astype(hop_dtype), preferred_element_type=f32)
        radius_proj = radius_proj + z @ params["w_rad"][i + 1] + params["b_rad"][i + 1]
    fuse = (pm_pd @ feat_b) @ params["w_fuse"] + params["b_fuse"]
    result = prev_proj + deg_proj + radius_proj + fuse
    n = out_feats // 2
    result = jnp.concatenate(
        [result[:, :n], jnp.maximum(result[:, n:], 0.0)], axis=1)
    mean = jnp.mean(result, axis=0, keepdims=True)
    var = jnp.mean((result - mean) ** 2, axis=0, keepdims=True)
    normed = (result - mean) * lax.rsqrt(var + 1e-5)
    return normed * params["gamma"] + params["beta"]


def init_params(key, in_feats, out_feats, radius):
    ks = jax.random.split(key, 8)
    scale = 1.0 / jnp.sqrt(in_feats)

    def lin_w(k):
        # pre-transposed: [in_feats, out_feats]
        return jax.random.uniform(k, (in_feats, out_feats), jnp.float32, -scale, scale)

    def lin_b(k):
        return jax.random.uniform(k, (1, out_feats), jnp.float32, -scale, scale)

    w_rad = jnp.stack([lin_w(k) for k in jax.random.split(ks[4], radius)], axis=0)
    b_rad = jnp.stack([lin_b(k) for k in jax.random.split(ks[5], radius)], axis=0)
    return {
        "w_prev": lin_w(ks[0]), "b_prev": lin_b(ks[1]),
        "w_deg": lin_w(ks[2]), "b_deg": lin_b(ks[3]),
        "w_rad": w_rad, "b_rad": b_rad,     # [radius, Fin, Fout], [radius, 1, Fout]
        "w_fuse": lin_w(ks[6]), "b_fuse": lin_b(ks[7]),
        "gamma": jnp.ones((1, out_feats), jnp.float32),   # BatchNorm1d default init
        "beta": jnp.zeros((1, out_feats), jnp.float32),
    }


if __name__ == "__main__":
    key = jax.random.PRNGKey(0)
    B = 2           # graphs per pallas_call (parallel grid axis)
    N = 16          # nodes per graph
    M = 24          # rows of feat_b (line-graph nodes), pm_pd: [N, M]
    in_feats = 8
    out_feats = 16
    radius = 3

    k_a, k_b, k_adj, k_pm, k_params = jax.random.split(key, 5)

    feat_a = jax.random.normal(k_a, (B, N, in_feats), jnp.float32)
    feat_b = jax.random.normal(k_b, (B, M, in_feats), jnp.float32)

    # random symmetric 0/1 adjacency per graph (no self loops); adj[b, dst, src]
    upper = (jax.random.uniform(k_adj, (B, N, N)) < 0.3).astype(jnp.float32)
    adj = jnp.triu(upper, 1)
    adj = adj + jnp.swapaxes(adj, -1, -2)

    deg = jnp.sum(adj, axis=-1, keepdims=True)              # [B, N, 1]
    pm_pd = jax.random.normal(k_pm, (B, N, M), jnp.float32)

    params = init_params(k_params, in_feats, out_feats, radius)

    out = lgnn_core_forward(
        feat_a, feat_b, deg, pm_pd, adj, params,
        radius=radius, out_feats=out_feats,
    )
    out = jax.block_until_ready(out)
    assert out.shape == (B, N, out_feats)

    ref = jnp.stack([
        lgnn_core_reference(
            feat_a[b], feat_b[b], deg[b], pm_pd[b], adj[b], params,
            radius=radius, out_feats=out_feats)
        for b in range(B)
    ])
    err = float(jnp.max(jnp.abs(out - ref)))
    assert jnp.allclose(out, ref, rtol=2e-2, atol=2e-2), err

    print("KERNEL_OK")
</pallas_src>

<mosaic_0001>
module attributes {stable_mosaic.version = 11 : i64} {
  func.func @_lgnn_core_kernel(%arg0: i32, %arg1: memref<1x16x8xf32, #tpu.memory_space<vmem>>, %arg2: memref<1x24x8xf32, #tpu.memory_space<vmem>>, %arg3: memref<1x16x1xf32, #tpu.memory_space<vmem>>, %arg4: memref<1x16x24xf32, #tpu.memory_space<vmem>>, %arg5: memref<1x16x16xbf16, #tpu.memory_space<vmem>>, %arg6: memref<48x16xf32, #tpu.memory_space<vmem>>, %arg7: memref<1x16xf32, #tpu.memory_space<vmem>>, %arg8: memref<1x16xf32, #tpu.memory_space<vmem>>, %arg9: memref<1x16xf32, #tpu.memory_space<vmem>>, %arg10: memref<1x16x16xf32, #tpu.memory_space<vmem>>) attributes {dimension_semantics = [#tpu.dimension_semantics<parallel>], iteration_bounds = array<i64: 2>, scalar_prefetch = 0 : i64, scratch_operands = 0 : i64, tpu.core_type = #tpu.core_type<tc>, window_params = [{transform_indices = @transform_0, window_bounds = array<i64: 1, 16, 8>}, {transform_indices = @transform_1, window_bounds = array<i64: 1, 24, 8>}, {transform_indices = @transform_2, window_bounds = array<i64: 1, 16, 1>}, {transform_indices = @transform_3, window_bounds = array<i64: 1, 16, 24>}, {transform_indices = @transform_4, window_bounds = array<i64: 1, 16, 16>}, {pipeline_mode = #tpu.pipeline_mode<synchronous>, transform_indices = @transform_5, window_bounds = array<i64: 48, 16>}, {pipeline_mode = #tpu.pipeline_mode<synchronous>, transform_indices = @transform_6, window_bounds = array<i64: 1, 16>}, {pipeline_mode = #tpu.pipeline_mode<synchronous>, transform_indices = @transform_7, window_bounds = array<i64: 1, 16>}, {pipeline_mode = #tpu.pipeline_mode<synchronous>, transform_indices = @transform_8, window_bounds = array<i64: 1, 16>}, {transform_indices = @transform_9, window_bounds = array<i64: 1, 16, 16>}]} {
    %c0 = arith.constant 0 : index
    %c0_0 = arith.constant 0 : index
    %c0_1 = arith.constant 0 : index
    %0 = vector.load %arg1[%c0, %c0_0, %c0_1] : memref<1x16x8xf32, #tpu.memory_space<vmem>>, vector<1x16x8xf32>
    %1 = vector.shape_cast %0 : vector<1x16x8xf32> to vector<16x8xf32>
    %c0_2 = arith.constant 0 : index
    %c0_3 = arith.constant 0 : index
    %c0_4 = arith.constant 0 : index
    %2 = vector.load %arg5[%c0_2, %c0_3, %c0_4] : memref<1x16x16xbf16, #tpu.memory_space<vmem>>, vector<1x16x16xbf16>
    %3 = vector.shape_cast %2 : vector<1x16x16xbf16> to vector<16x16xbf16>
    %c0_5 = arith.constant 0 : index
    %c0_6 = arith.constant 0 : index
    %c0_7 = arith.constant 0 : index
    %4 = vector.load %arg4[%c0_5, %c0_6, %c0_7] : memref<1x16x24xf32, #tpu.memory_space<vmem>>, vector<1x16x24xf32>
    %5 = vector.shape_cast %4 : vector<1x16x24xf32> to vector<16x24xf32>
    %c0_8 = arith.constant 0 : index
    %c0_9 = arith.constant 0 : index
    %c0_10 = arith.constant 0 : index
    %6 = vector.load %arg2[%c0_8, %c0_9, %c0_10] : memref<1x24x8xf32, #tpu.memory_space<vmem>>, vector<1x24x8xf32>
    %7 = vector.shape_cast %6 : vector<1x24x8xf32> to vector<24x8xf32>
    %cst = arith.constant dense<0.000000e+00> : vector<16x8xf32>
    %8 = tpu.matmul %5, %7, %cst {dimension_numbers = #tpu.dot_dimension_numbers<[1], [0], [0], [1], [0, 0, 1, 1], [], []>} : vector<16x24xf32>, vector<24x8xf32>, vector<16x8xf32> -> vector<16x8xf32>
    %9 = arith.truncf %1 : vector<16x8xf32> to vector<16x8xbf16>
    %cst_11 = arith.constant dense<0.000000e+00> : vector<16x8xf32>
    %10 = tpu.matmul %3, %9, %cst_11 {dimension_numbers = #tpu.dot_dimension_numbers<[1], [0], [0], [1], [0, 0, 1, 1], [], []>} : vector<16x16xbf16>, vector<16x8xbf16>, vector<16x8xf32> -> vector<16x8xf32>
    %11 = arith.truncf %10 : vector<16x8xf32> to vector<16x8xbf16>
    %cst_12 = arith.constant dense<0.000000e+00> : vector<16x8xf32>
    %12 = tpu.matmul %3, %11, %cst_12 {dimension_numbers = #tpu.dot_dimension_numbers<[1], [0], [0], [1], [0, 0, 1, 1], [], []>} : vector<16x16xbf16>, vector<16x8xbf16>, vector<16x8xf32> -> vector<16x8xf32>
    %13 = arith.truncf %12 : vector<16x8xf32> to vector<16x8xbf16>
    %cst_13 = arith.constant dense<0.000000e+00> : vector<16x8xf32>
    %14 = tpu.matmul %3, %13, %cst_13 {dimension_numbers = #tpu.dot_dimension_numbers<[1], [0], [0], [1], [0, 0, 1, 1], [], []>} : vector<16x16xbf16>, vector<16x8xbf16>, vector<16x8xf32> -> vector<16x8xf32>
    %15 = arith.truncf %14 : vector<16x8xf32> to vector<16x8xbf16>
    %cst_14 = arith.constant dense<0.000000e+00> : vector<16x8xf32>
    %16 = tpu.matmul %3, %15, %cst_14 {dimension_numbers = #tpu.dot_dimension_numbers<[1], [0], [0], [1], [0, 0, 1, 1], [], []>} : vector<16x16xbf16>, vector<16x8xbf16>, vector<16x8xf32> -> vector<16x8xf32>
    %c0_15 = arith.constant 0 : index
    %c0_16 = arith.constant 0 : index
    %c0_17 = arith.constant 0 : index
    %17 = vector.load %arg3[%c0_15, %c0_16, %c0_17] : memref<1x16x1xf32, #tpu.memory_space<vmem>>, vector<1x16x1xf32>
    %18 = vector.shape_cast %17 : vector<1x16x1xf32> to vector<16x1xf32>
    %19 = vector.broadcast %18 : vector<16x1xf32> to vector<16x8xf32>
    %20 = arith.mulf %19, %1 : vector<16x8xf32>
    %21 = tpu.concatenate %1, %20, %10, %12, %16, %8 in 1 : vector<16x8xf32>, vector<16x8xf32>, vector<16x8xf32>, vector<16x8xf32>, vector<16x8xf32>, vector<16x8xf32> -> vector<16x48xf32>
    %c0_18 = arith.constant 0 : index
    %c0_19 = arith.constant 0 : index
    %22 = vector.load %arg6[%c0_18, %c0_19] : memref<48x16xf32, #tpu.memory_space<vmem>>, vector<48x16xf32>
    %cst_20 = arith.constant dense<0.000000e+00> : vector<16x16xf32>
    %23 = tpu.matmul %21, %22, %cst_20 {dimension_numbers = #tpu.dot_dimension_numbers<[1], [0], [0], [1], [0, 0, 1, 1], [], []>} : vector<16x48xf32>, vector<48x16xf32>, vector<16x16xf32> -> vector<16x16xf32>
    %c0_21 = arith.constant 0 : index
    %c0_22 = arith.constant 0 : index
    %24 = vector.load %arg7[%c0_21, %c0_22] : memref<1x16xf32, #tpu.memory_space<vmem>>, vector<1x16xf32>
    %25 = vector.broadcast %24 : vector<1x16xf32> to vector<16x16xf32>
    %26 = arith.addf %23, %25 : vector<16x16xf32>
    %27 = tpu.iota {dimensions = array<i32: 1>} : vector<16x16xi32>
    %c8_i32 = arith.constant 8 : i32
    %28 = vector.broadcast %c8_i32 : i32 to vector<16x16xi32>
    %29 = arith.cmpi sge, %27, %28 : vector<16x16xi32>
    %cst_23 = arith.constant 0.000000e+00 : f32
    %30 = vector.broadcast %cst_23 : f32 to vector<16x16xf32>
    %31 = arith.maximumf %26, %30 : vector<16x16xf32>
    %32 = arith.select %29, %31, %26 : vector<16x16xi1>, vector<16x16xf32>
    %cst_24 = arith.constant dense<0.000000e+00> : vector<16xf32>
    %33 = vector.multi_reduction <add>, %32, %cst_24 [0] : vector<16x16xf32> to vector<16xf32>
    %34 = vector.shape_cast %33 : vector<16xf32> to vector<1x16xf32>
    %cst_25 = arith.constant 1.600000e+01 : f32
    %35 = vector.broadcast %cst_25 : f32 to vector<1x16xf32>
    %36 = arith.divf %34, %35 : vector<1x16xf32>
    %37 = vector.broadcast %36 : vector<1x16xf32> to vector<16x16xf32>
    %38 = arith.subf %32, %37 : vector<16x16xf32>
    %39 = arith.mulf %38, %38 : vector<16x16xf32>
    %cst_26 = arith.constant dense<0.000000e+00> : vector<16xf32>
    %40 = vector.multi_reduction <add>, %39, %cst_26 [0] : vector<16x16xf32> to vector<16xf32>
    %41 = vector.shape_cast %40 : vector<16xf32> to vector<1x16xf32>
    %cst_27 = arith.constant 1.600000e+01 : f32
    %42 = vector.broadcast %cst_27 : f32 to vector<1x16xf32>
    %43 = arith.divf %41, %42 : vector<1x16xf32>
    %44 = vector.broadcast %36 : vector<1x16xf32> to vector<16x16xf32>
    %45 = arith.subf %32, %44 : vector<16x16xf32>
    %cst_28 = arith.constant 9.99999974E-6 : f32
    %46 = vector.broadcast %cst_28 : f32 to vector<1x16xf32>
    %47 = arith.addf %43, %46 : vector<1x16xf32>
    %48 = math.rsqrt %47 : vector<1x16xf32>
    %49 = vector.broadcast %48 : vector<1x16xf32> to vector<16x16xf32>
    %50 = arith.mulf %45, %49 : vector<16x16xf32>
    %c0_29 = arith.constant 0 : index
    %c0_30 = arith.constant 0 : index
    %51 = vector.load %arg8[%c0_29, %c0_30] : memref<1x16xf32, #tpu.memory_space<vmem>>, vector<1x16xf32>
    %52 = vector.broadcast %51 : vector<1x16xf32> to vector<16x16xf32>
    %53 = arith.mulf %50, %52 : vector<16x16xf32>
    %c0_31 = arith.constant 0 : index
    %c0_32 = arith.constant 0 : index
    %54 = vector.load %arg9[%c0_31, %c0_32] : memref<1x16xf32, #tpu.memory_space<vmem>>, vector<1x16xf32>
    %55 = vector.broadcast %54 : vector<1x16xf32> to vector<16x16xf32>
    %56 = arith.addf %53, %55 : vector<16x16xf32>
    %c0_33 = arith.constant 0 : index
    %c0_34 = arith.constant 0 : index
    %c0_35 = arith.constant 0 : index
    %57 = vector.load %arg10[%c0_33, %c0_34, %c0_35] : memref<1x16x16xf32, #tpu.memory_space<vmem>>, vector<1x16x16xf32>
    %58 = vector.shape_cast %57 : vector<1x16x16xf32> to vector<16x16xf32>
    %59 = vector.shape_cast %56 : vector<16x16xf32> to vector<1x16x16xf32>
    tpu.vector_store %arg10[%c0_33, %c0_34, %c0_35], %59 {strides = array<i32>} : memref<1x16x16xf32, #tpu.memory_space<vmem>>, vector<1x16x16xf32>,
    return
  }
  func.func @transform_0(%arg0: i32) -> (i32, i32, i32) {
    %c0_i32 = arith.constant 0 : i32
    %c0_i32_0 = arith.constant 0 : i32
    %c0_i32_1 = arith.constant 0 : i32
    return %arg0, %c0_i32, %c0_i32_0 : i32, i32, i32
  }
  func.func @transform_1(%arg0: i32) -> (i32, i32, i32) {
    %c0_i32 = arith.constant 0 : i32
    %c0_i32_0 = arith.constant 0 : i32
    %c0_i32_1 = arith.constant 0 : i32
    return %arg0, %c0_i32, %c0_i32_0 : i32, i32, i32
  }
  func.func @transform_2(%arg0: i32) -> (i32, i32, i32) {
    %c0_i32 = arith.constant 0 : i32
    %c0_i32_0 = arith.constant 0 : i32
    %c0_i32_1 = arith.constant 0 : i32
    return %arg0, %c0_i32, %c0_i32_0 : i32, i32, i32
  }
  func.func @transform_3(%arg0: i32) -> (i32, i32, i32) {
    %c0_i32 = arith.constant 0 : i32
    %c0_i32_0 = arith.constant 0 : i32
    %c0_i32_1 = arith.constant 0 : i32
    return %arg0, %c0_i32, %c0_i32_0 : i32, i32, i32
  }
  func.func @transform_4(%arg0: i32) -> (i32, i32, i32) {
    %c0_i32 = arith.constant 0 : i32
    %c0_i32_0 = arith.constant 0 : i32
    %c0_i32_1 = arith.constant 0 : i32
    return %arg0, %c0_i32, %c0_i32_0 : i32, i32, i32
  }
  func.func @transform_5(%arg0: i32) -> (i32, i32) {
    %c0_i32 = arith.constant 0 : i32
    %c0_i32_0 = arith.constant 0 : i32
    %c0_i32_1 = arith.constant 0 : i32
    return %c0_i32, %c0_i32_0 : i32, i32
  }
  func.func @transform_6(%arg0: i32) -> (i32, i32) {
    %c0_i32 = arith.constant 0 : i32
    %c0_i32_0 = arith.constant 0 : i32
    %c0_i32_1 = arith.constant 0 : i32
    return %c0_i32, %c0_i32_0 : i32, i32
  }
  func.func @transform_7(%arg0: i32) -> (i32, i32) {
    %c0_i32 = arith.constant 0 : i32
    %c0_i32_0 = arith.constant 0 : i32
    %c0_i32_1 = arith.constant 0 : i32
    return %c0_i32, %c0_i32_0 : i32, i32
  }
  func.func @transform_8(%arg0: i32) -> (i32, i32) {
    %c0_i32 = arith.constant 0 : i32
    %c0_i32_0 = arith.constant 0 : i32
    %c0_i32_1 = arith.constant 0 : i32
    return %c0_i32, %c0_i32_0 : i32, i32
  }
  func.func @transform_9(%arg0: i32) -> (i32, i32, i32) {
    %c0_i32 = arith.constant 0 : i32
    %c0_i32_0 = arith.constant 0 : i32
    %c0_i32_1 = arith.constant 0 : i32
    return %arg0, %c0_i32, %c0_i32_0 : i32, i32, i32
  }
}

</mosaic_0001>

<llo_original>
// kernel: tpu_custom_call.1
$region0: #{tpu_custom_call.1}
  #allocation0 [shape = 'u32[]', space=smem, size = 0x4, offset = 0x4, fixed_abs, tag = 'smem constant byte address 0x4 - core index']
  #allocation1 [shape = 'u32[144,128]{1,0:T(1,128)}', space=vmem, size = 0x12000, scoped, tag = 'internal scratch']
  %s0 = inlined_call_operand.vmem [shape: f32[2,16,8], index: 0, kind: input, shape index: {}]
  %s1 = inlined_call_operand.vmem [shape: f32[2,24,8], index: 1, kind: input, shape index: {}]
  %s2 = inlined_call_operand.vmem [shape: f32[2,16,1], index: 2, kind: input, shape index: {}]
  %s3 = inlined_call_operand.vmem [shape: f32[2,16,24], index: 3, kind: input, shape index: {}]
  %s4 = inlined_call_operand.vmem [shape: bf16[2,16,16], index: 4, kind: input, shape index: {}]
  %s5 = inlined_call_operand.vmem [shape: f32[48,16], index: 5, kind: input, shape index: {}]
  %s6 = inlined_call_operand.vmem [shape: f32[1,16], index: 6, kind: input, shape index: {}]
  %s7 = inlined_call_operand.vmem [shape: f32[1,16], index: 7, kind: input, shape index: {}]
  %s8 = inlined_call_operand.vmem [shape: f32[1,16], index: 8, kind: input, shape index: {}]
  %s9 = inlined_call_operand.hbm [shape: f32[2,16,16], index: 9, kind: output, shape index: {}]
  %s10 = sld [smem:[#allocation0]]
  $region69: #{tpu_custom_call.1} parent=0
    _
  %s12 = ssub.s32 1, %s10
  %s13 = scalar_select 0, %s12, %s10
  $region1: #{tpu_custom_call.1} parent=0
    #allocation2 [shape = 'u8[16384]{0}', space=vmem, size = 0x4000, scoped, tag = 'output window, operand 0']
    #allocation3 [shape = 's32[2]{0}', space=sflag, size = 0x8, scoped, tag = 'scoped memory for tpu_custom_call.1']
    %14 = vsyncpa [#allocation3], 0
    %s15 = scalar_lea.sflag [#allocation3], 1
    %16 = vsyncpa %s15, 0
    loop: start=0, step=1, limit=4
    $region2: #{tpu_custom_call.1} parent=1 // loop_pre_header
      _
    $region3: #{tpu_custom_call.1} parent=1 // loop_header
      %s18 = sphi 0, %s22
      %p19 = scmp.ge.s32.totalorder %s18, 4
      %s28 = sphi 0, %s30
      %s31 = sphi 0, %s28
      %s32 = sphi 0, %s31
      %s48 = sphi 0, %s32
      %s54 = sphi 0, %s56
      %s57 = sphi 0, %s54
      %s58 = sphi 0, %s57
      %s74 = sphi 0, %s58
      %s80 = sphi 0, %s82
      %s83 = sphi 0, %s80
      %s84 = sphi 0, %s83
      %s100 = sphi 0, %s84
      %s106 = sphi 0, %s108
      %s109 = sphi 0, %s106
      %s110 = sphi 0, %s109
      %s126 = sphi 0, %s110
      %s132 = sphi 0, %s134
      %s135 = sphi 0, %s132
      %s136 = sphi 0, %s135
      %s152 = sphi 0, %s136
      %s156 = sphi 0, %s156
      %s158 = sphi 0, %s156
      %s159 = sphi 0, %s158
      %s173 = sphi 0, %s159
      %s177 = sphi 0, %s177
      %s179 = sphi 0, %s177
      %s180 = sphi 0, %s179
      %s194 = sphi 0, %s180
      %s198 = sphi 0, %s198
      %s200 = sphi 0, %s198
      %s201 = sphi 0, %s200
      %s215 = sphi 0, %s201
      %s219 = sphi 0, %s219
      %s221 = sphi 0, %s219
      %s222 = sphi 0, %s221
      %s236 = sphi 0, %s222
      %s242 = sphi 0, %s244
      %s245 = sphi 0, %s242
      %s246 = sphi 0, %s245
      %s262 = sphi 0, %s246
    $region4: #{tpu_custom_call.1} parent=1 // loop_header_branch
      %21 = sbr.rel (%p19) target = $region8
    $region5: #{tpu_custom_call.1} parent=1 // loop_body
      %s23 = ssub.s32 %s18, 1
      %s24 = ssub.s32 %s18, 2
      %s25 = sadd.s32 %s18, 1
      %s26 = ssub.s32 %s18, %s25
      %p27 = scmp.eq.s32.totalorder %s26, 0
      %s29 = sadd.s32 %s28, 1
      %s30 = scalar_select %p27, %s28, %s29
      %p33 = pneg %p27
      %p34 = scmp.eq.s32.totalorder %s18, 1
      %p35 = por %p33, %p34
      %p36 = scmp.ne.s32.totalorder %s28, %s31
      %p37 = scmp.eq.s32.totalorder %s18, 0
      %p38 = por %p36, %p37
      %p39 = scmp.ne.s32.totalorder %s28, %s31
      %p40 = scmp.eq.s32.totalorder %s23, 1
      %p41 = por %p39, %p40
      %p42 = scmp.ne.s32.totalorder %s31, %s32
      %p43 = scmp.eq.s32.totalorder %s23, 0
      %p44 = por %p42, %p43
      %p45 = scmp.ne.s32.totalorder %s31, %s32
      %p46 = scmp.eq.s32.totalorder %s24, 1
      %p47 = por %p45, %p46
      %p49 = scmp.ne.s32.totalorder %s32, %s48
      %p50 = scmp.eq.s32.totalorder %s24, 0
      %p51 = por %p49, %p50
      %s52 = ssub.s32 %s18, %s25
      %p53 = scmp.eq.s32.totalorder %s52, 0
      %s55 = sadd.s32 %s54, 1
      %s56 = scalar_select %p53, %s54, %s55
      %p59 = pneg %p53
      %p60 = scmp.eq.s32.totalorder %s18, 1
      %p61 = por %p59, %p60
      %p62 = scmp.ne.s32.totalorder %s54, %s57
      %p63 = scmp.eq.s32.totalorder %s18, 0
      %p64 = por %p62, %p63
      %p65 = scmp.ne.s32.totalorder %s54, %s57
      %p66 = scmp.eq.s32.totalorder %s23, 1
      %p67 = por %p65, %p66
      %p68 = scmp.ne.s32.totalorder %s57, %s58
      %p69 = scmp.eq.s32.totalorder %s23, 0
      %p70 = por %p68, %p69
      %p71 = scmp.ne.s32.totalorder %s57, %s58
      %p72 = scmp.eq.s32.totalorder %s24, 1
      %p73 = por %p71, %p72
      %p75 = scmp.ne.s32.totalorder %s58, %s74
      %p76 = scmp.eq.s32.totalorder %s24, 0
      %p77 = por %p75, %p76
      %s78 = ssub.s32 %s18, %s25
      %p79 = scmp.eq.s32.totalorder %s78, 0
      %s81 = sadd.s32 %s80, 1
      %s82 = scalar_select %p79, %s80, %s81
      %p85 = pneg %p79
      %p86 = scmp.eq.s32.totalorder %s18, 1
      %p87 = por %p85, %p86
      %p88 = scmp.ne.s32.totalorder %s80, %s83
      %p89 = scmp.eq.s32.totalorder %s18, 0
      %p90 = por %p88, %p89
      %p91 = scmp.ne.s32.totalorder %s80, %s83
      %p92 = scmp.eq.s32.totalorder %s23, 1
      %p93 = por %p91, %p92
      %p94 = scmp.ne.s32.totalorder %s83, %s84
      %p95 = scmp.eq.s32.totalorder %s23, 0
      %p96 = por %p94, %p95
      %p97 = scmp.ne.s32.totalorder %s83, %s84
      %p98 = scmp.eq.s32.totalorder %s24, 1
      %p99 = por %p97, %p98
      %p101 = scmp.ne.s32.totalorder %s84, %s100
      %p102 = scmp.eq.s32.totalorder %s24, 0
      %p103 = por %p101, %p102
      %s104 = ssub.s32 %s18, %s25
      %p105 = scmp.eq.s32.totalorder %s104, 0
      %s107 = sadd.s32 %s106, 1
      %s108 = scalar_select %p105, %s106, %s107
      %p111 = pneg %p105
      %p112 = scmp.eq.s32.totalorder %s18, 1
      %p113 = por %p111, %p112
      %p114 = scmp.ne.s32.totalorder %s106, %s109
      %p115 = scmp.eq.s32.totalorder %s18, 0
      %p116 = por %p114, %p115
      %p117 = scmp.ne.s32.totalorder %s106, %s109
      %p118 = scmp.eq.s32.totalorder %s23, 1
      %p119 = por %p117, %p118
      %p120 = scmp.ne.s32.totalorder %s109, %s110
      %p121 = scmp.eq.s32.totalorder %s23, 0
      %p122 = por %p120, %p121
      %p123 = scmp.ne.s32.totalorder %s109, %s110
      %p124 = scmp.eq.s32.totalorder %s24, 1
      %p125 = por %p123, %p124
      %p127 = scmp.ne.s32.totalorder %s110, %s126
      %p128 = scmp.eq.s32.totalorder %s24, 0
      %p129 = por %p127, %p128
      %s130 = ssub.s32 %s18, %s25
      %p131 = scmp.eq.s32.totalorder %s130, 0
      %s133 = sadd.s32 %s132, 1
      %s134 = scalar_select %p131, %s132, %s133
      %p137 = pneg %p131
      %p138 = scmp.eq.s32.totalorder %s18, 1
      %p139 = por %p137, %p138
      %p140 = scmp.ne.s32.totalorder %s132, %s135
      %p141 = scmp.eq.s32.totalorder %s18, 0
      %p142 = por %p140, %p141
      %p143 = scmp.ne.s32.totalorder %s132, %s135
      %p144 = scmp.eq.s32.totalorder %s23, 1
      %p145 = por %p143, %p144
      %p146 = scmp.ne.s32.totalorder %s135, %s136
      %p147 = scmp.eq.s32.totalorder %s23, 0
      %p148 = por %p146, %p147
      %p149 = scmp.ne.s32.totalorder %s135, %s136
      %p150 = scmp.eq.s32.totalorder %s24, 1
      %p151 = por %p149, %p150
      %p153 = scmp.ne.s32.totalorder %s136, %s152
      %p154 = scmp.eq.s32.totalorder %s24, 0
      %p155 = por %p153, %p154
      %s157 = sadd.s32 %s156, 1
      %p160 = scmp.eq.s32.totalorder %s18, 1
      %p161 = scmp.ne.s32.totalorder %s156, %s158
      %p162 = scmp.eq.s32.totalorder %s18, 0
      %p163 = por %p161, %p162
      %p164 = scmp.ne.s32.totalorder %s156, %s158
      %p165 = scmp.eq.s32.totalorder %s23, 1
      %p166 = por %p164, %p165
      %p167 = scmp.ne.s32.totalorder %s158, %s159
      %p168 = scmp.eq.s32.totalorder %s23, 0
      %p169 = por %p167, %p168
      %p170 = scmp.ne.s32.totalorder %s158, %s159
      %p171 = scmp.eq.s32.totalorder %s24, 1
      %p172 = por %p170, %p171
      %p174 = scmp.ne.s32.totalorder %s159, %s173
      %p175 = scmp.eq.s32.totalorder %s24, 0
      %p176 = por %p174, %p175
      %s178 = sadd.s32 %s177, 1
      %p181 = scmp.eq.s32.totalorder %s18, 1
      %p182 = scmp.ne.s32.totalorder %s177, %s179
      %p183 = scmp.eq.s32.totalorder %s18, 0
      %p184 = por %p182, %p183
      %p185 = scmp.ne.s32.totalorder %s177, %s179
      %p186 = scmp.eq.s32.totalorder %s23, 1
      %p187 = por %p185, %p186
      %p188 = scmp.ne.s32.totalorder %s179, %s180
      %p189 = scmp.eq.s32.totalorder %s23, 0
      %p190 = por %p188, %p189
      %p191 = scmp.ne.s32.totalorder %s179, %s180
      %p192 = scmp.eq.s32.totalorder %s24, 1
      %p193 = por %p191, %p192
      %p195 = scmp.ne.s32.totalorder %s180, %s194
      %p196 = scmp.eq.s32.totalorder %s24, 0
      %p197 = por %p195, %p196
      %s199 = sadd.s32 %s198, 1
      %p202 = scmp.eq.s32.totalorder %s18, 1
      %p203 = scmp.ne.s32.totalorder %s198, %s200
      %p204 = scmp.eq.s32.totalorder %s18, 0
      %p205 = por %p203, %p204
      %p206 = scmp.ne.s32.totalorder %s198, %s200
      %p207 = scmp.eq.s32.totalorder %s23, 1
      %p208 = por %p206, %p207
      %p209 = scmp.ne.s32.totalorder %s200, %s201
      %p210 = scmp.eq.s32.totalorder %s23, 0
      %p211 = por %p209, %p210
      %p212 = scmp.ne.s32.totalorder %s200, %s201
      %p213 = scmp.eq.s32.totalorder %s24, 1
      %p214 = por %p212, %p213
      %p216 = scmp.ne.s32.totalorder %s201, %s215
      %p217 = scmp.eq.s32.totalorder %s24, 0
      %p218 = por %p216, %p217
      %s220 = sadd.s32 %s219, 1
      %p223 = scmp.eq.s32.totalorder %s18, 1
      %p224 = scmp.ne.s32.totalorder %s219, %s221
      %p225 = scmp.eq.s32.totalorder %s18, 0
      %p226 = por %p224, %p225
      %p227 = scmp.ne.s32.totalorder %s219, %s221
      %p228 = scmp.eq.s32.totalorder %s23, 1
      %p229 = por %p227, %p228
      %p230 = scmp.ne.s32.totalorder %s221, %s222
      %p231 = scmp.eq.s32.totalorder %s23, 0
      %p232 = por %p230, %p231
      %p233 = scmp.ne.s32.totalorder %s221, %s222
      %p234 = scmp.eq.s32.totalorder %s24, 1
      %p235 = por %p233, %p234
      %p237 = scmp.ne.s32.totalorder %s222, %s236
      %p238 = scmp.eq.s32.totalorder %s24, 0
      %p239 = por %p237, %p238
      %s240 = ssub.s32 %s18, %s25
      %p241 = scmp.eq.s32.totalorder %s240, 0
      %s243 = sadd.s32 %s242, 1
      %s244 = scalar_select %p241, %s242, %s243
      %p247 = pneg %p241
      %p248 = scmp.eq.s32.totalorder %s18, 1
      %p249 = por %p247, %p248
      %p250 = scmp.ne.s32.totalorder %s242, %s245
      %p251 = scmp.eq.s32.totalorder %s18, 0
      %p252 = por %p250, %p251
      %p253 = scmp.ne.s32.totalorder %s242, %s245
      %p254 = scmp.eq.s32.totalorder %s23, 1
      %p255 = por %p253, %p254
      %p256 = scmp.ne.s32.totalorder %s245, %s246
      %p257 = scmp.eq.s32.totalorder %s23, 0
      %p258 = por %p256, %p257
      %p259 = scmp.ne.s32.totalorder %s245, %s246
      %p260 = scmp.eq.s32.totalorder %s24, 1
      %p261 = por %p259, %p260
      %p263 = scmp.ne.s32.totalorder %s246, %s262
      %p264 = scmp.eq.s32.totalorder %s24, 0
      %p265 = por %p263, %p264
      %p266 = scmp.le.s32.totalorder 1, %s18
      %p267 = scmp.lt.s32.totalorder %s18, 3
      %p268 = pnand %p266, %p267
      %p269 = pneg %p268
      // Predicated region
      $region9: #{tpu_custom_call.1} parent=5 // pred_check
        _
      $region10: #{tpu_custom_call.1} parent=5 // pred_check_branch
        %271 = sbr.rel (%p268) target = $region12
      $region11: #{tpu_custom_call.1} parent=5 // pred_region
        %s272 = ssub.s32 %s18, 1
        // Predicated region
        $region13: #{tpu_custom_call.1} parent=11 // pred_check
          %p273 = pneg %p169
        $region14: #{tpu_custom_call.1} parent=11 // pred_check_branch
          %275 = sbr.rel (%p273) target = $region16
        $region15: #{tpu_custom_call.1} parent=11 // pred_region
          _
        $region16: #{tpu_custom_call.1} parent=11 // pred_fallthru
          _
        // Predicated region
        $region17: #{tpu_custom_call.1} parent=11 // pred_check
          %p276 = pneg %p190
        $region18: #{tpu_custom_call.1} parent=11 // pred_check_branch
          %278 = sbr.rel (%p276) target = $region20
        $region19: #{tpu_custom_call.1} parent=11 // pred_region
          _
        $region20: #{tpu_custom_call.1} parent=11 // pred_fallthru
          _
        // Predicated region
        $region21: #{tpu_custom_call.1} parent=11 // pred_check
          %p279 = pneg %p211
        $region22: #{tpu_custom_call.1} parent=11 // pred_check_branch
          %281 = sbr.rel (%p279) target = $region24
        $region23: #{tpu_custom_call.1} parent=11 // pred_region
          _
        $region24: #{tpu_custom_call.1} parent=11 // pred_fallthru
          _
        // Predicated region
        $region25: #{tpu_custom_call.1} parent=11 // pred_check
          %p282 = pneg %p232
        $region26: #{tpu_custom_call.1} parent=11 // pred_check_branch
          %284 = sbr.rel (%p282) target = $region28
        $region27: #{tpu_custom_call.1} parent=11 // pred_region
          _
        $region28: #{tpu_custom_call.1} parent=11 // pred_fallthru
          _
      $region12: #{tpu_custom_call.1} parent=5 // pred_fallthru
        _
      %p285 = scmp.lt.s32.totalorder %s18, 2
      // Predicated region
      $region29: #{tpu_custom_call.1} parent=5 // pred_check
        %p286 = pneg %p285
      $region30: #{tpu_custom_call.1} parent=5 // pred_check_branch
        %288 = sbr.rel (%p286) target = $region32
      $region31: #{tpu_custom_call.1} parent=5 // pred_region
        // Predicated region
        $region33: #{tpu_custom_call.1} parent=31 // pred_check
          %p289 = pneg %p38
        $region34: #{tpu_custom_call.1} parent=31 // pred_check_branch
          %291 = sbr.rel (%p289) target = $region36
        $region35: #{tpu_custom_call.1} parent=31 // pred_region
          %p292 = scmp.lt.s32.totalorder %s18, 1
          %s293 = scalar_select %p292, %s18, 1
          %s294 = smul.addr %s293, 2
          %s295 = smul.addr %s294, 8
          %s296 = scalar_lea.vmem %s0, %s295
        $region36: #{tpu_custom_call.1} parent=31 // pred_fallthru
          _
        // Predicated region
        $region37: #{tpu_custom_call.1} parent=31 // pred_check
          %p297 = pneg %p64
        $region38: #{tpu_custom_call.1} parent=31 // pred_check_branch
          %299 = sbr.rel (%p297) target = $region40
        $region39: #{tpu_custom_call.1} parent=31 // pred_region
          %p300 = scmp.lt.s32.totalorder %s18, 1
          %s301 = scalar_select %p300, %s18, 1
          %s302 = smul.addr %s301, 3
          %s303 = smul.addr %s302, 8
          %s304 = scalar_lea.vmem %s1, %s303
        $region40: #{tpu_custom_call.1} parent=31 // pred_fallthru
          _
        // Predicated region
        $region41: #{tpu_custom_call.1} parent=31 // pred_check
          %p305 = pneg %p90
        $region42: #{tpu_custom_call.1} parent=31 // pred_check_branch
          %307 = sbr.rel (%p305) target = $region44
        $region43: #{tpu_custom_call.1} parent=31 // pred_region
          %p308 = scmp.lt.s32.totalorder %s18, 1
          %s309 = scalar_select %p308, %s18, 1
          %s310 = smul.addr %s309, 2
          %s311 = smul.addr %s310, 8
          %s312 = scalar_lea.vmem %s2, %s311
        $region44: #{tpu_custom_call.1} parent=31 // pred_fallthru
          _
        // Predicated region
        $region45: #{tpu_custom_call.1} parent=31 // pred_check
          %p313 = pneg %p116
        $region46: #{tpu_custom_call.1} parent=31 // pred_check_branch
          %315 = sbr.rel (%p313) target = $region48
        $region47: #{tpu_custom_call.1} parent=31 // pred_region
          %p316 = scmp.lt.s32.totalorder %s18, 1
          %s317 = scalar_select %p316, %s18, 1
          %s318 = smul.addr %s317, 2
          %s319 = smul.addr %s318, 8
          %s320 = scalar_lea.vmem %s3, %s319
        $region48: #{tpu_custom_call.1} parent=31 // pred_fallthru
          _
        // Predicated region
        $region49: #{tpu_custom_call.1} parent=31 // pred_check
          %p321 = pneg %p142
        $region50: #{tpu_custom_call.1} parent=31 // pred_check_branch
          %323 = sbr.rel (%p321) target = $region52
        $region51: #{tpu_custom_call.1} parent=31 // pred_region
          %p324 = scmp.lt.s32.totalorder %s18, 1
          %s325 = scalar_select %p324, %s18, 1
          %s326 = smul.addr %s325, 2
          %s327 = smul.addr %s326, 4
          %s328 = scalar_lea.vmem %s4, %s327
        $region52: #{tpu_custom_call.1} parent=31 // pred_fallthru
          _
      $region32: #{tpu_custom_call.1} parent=5 // pred_fallthru
        _
      %p329 = scmp.le.s32.totalorder 1, %s18
      %p330 = scmp.lt.s32.totalorder %s18, 3
      %p331 = pnand %p329, %p330
      %p332 = pneg %p331
      // Predicated region
      $region53: #{tpu_custom_call.1} parent=5 // pred_check
        _
      $region54: #{tpu_custom_call.1} parent=5 // pred_check_branch
        %334 = sbr.rel (%p331) target = $region56
      $region55: #{tpu_custom_call.1} parent=5 // pred_region
        %s335 = ssub.s32 %s18, 1
        %p336 = scmp.lt.s32.totalorder %s23, 1
        %s337 = scalar_select %p336, %s23, 1
        %s338 = smul.addr %s337, 2
        %s339 = smul.addr %s338, 8
        %s340 = scalar_lea.vmem %s0, %s339
        %p341 = pneg %p44
        %p342 = pneg %p41
        %p343 = scmp.lt.s32.totalorder %s23, 1
        %s344 = scalar_select %p343, %s23, 1
        %s345 = smul.addr %s344, 3
        %s346 = smul.addr %s345, 8
        %s347 = scalar_lea.vmem %s1, %s346
        %p348 = pneg %p70
        %p349 = pneg %p67
        %p350 = scmp.lt.s32.totalorder %s23, 1
        %s351 = scalar_select %p350, %s23, 1
        %s352 = smul.addr %s351, 2
        %s353 = smul.addr %s352, 8
        %s354 = scalar_lea.vmem %s2, %s353
        %p355 = pneg %p96
        %p356 = pneg %p93
        %p357 = scmp.lt.s32.totalorder %s23, 1
        %s358 = scalar_select %p357, %s23, 1
        %s359 = smul.addr %s358, 2
        %s360 = smul.addr %s359, 8
        %s361 = scalar_lea.vmem %s3, %s360
        %p362 = pneg %p122
        %p363 = pneg %p119
        %p364 = scmp.lt.s32.totalorder %s23, 1
        %s365 = scalar_select %p364, %s23, 1
        %s366 = smul.addr %s365, 2
        %s367 = smul.addr %s366, 4
        %s368 = scalar_lea.vmem %s4, %s367
        %p369 = pneg %p148
        %p370 = pneg %p145
        %p371 = pneg %p169
        %p372 = pneg %p166
        %p373 = pneg %p190
        %p374 = pneg %p187
        %p375 = pneg %p211
        %p376 = pneg %p208
        %p377 = pneg %p232
        %p378 = pneg %p229
        %p379 = pneg %p258
        %p380 = pneg %p255
        %s381 = sand.u32 %s245, 1
        %s382 = scalar_lea.sflag [#allocation3], %s381
        %s383 = sand.u32 %s245, 1
        %s384 = smul.addr %s383, 16
        %s385 = scalar_lea.vmem [#allocation2], %s384
        %p386 = scmp.lt.s32.totalorder %s23, 1
        %s387 = scalar_select %p386, %s23, 1
        %s388 = smul.addr %s387, 2
        %s389 = smul.addr %s388, 8
        %s390 = scalar_lea.vmem %s0, %s389
        %p391 = scmp.lt.s32.totalorder %s23, 1
        %s392 = scalar_select %p391, %s23, 1
        %s393 = smul.addr %s392, 3
        %s394 = smul.addr %s393, 8
        %s395 = scalar_lea.vmem %s1, %s394
        %p396 = scmp.lt.s32.totalorder %s23, 1
        %s397 = scalar_select %p396, %s23, 1
        %s398 = smul.addr %s397, 2
        %s399 = smul.addr %s398, 8
        %s400 = scalar_lea.vmem %s2, %s399
        %p401 = scmp.lt.s32.totalorder %s23, 1
        %s402 = scalar_select %p401, %s23, 1
        %s403 = smul.addr %s402, 2
        %s404 = smul.addr %s403, 8
        %s405 = scalar_lea.vmem %s3, %s404
        %p406 = scmp.lt.s32.totalorder %s23, 1
        %s407 = scalar_select %p406, %s23, 1
        %s408 = smul.addr %s407, 2
        %s409 = smul.addr %s408, 4
        %s410 = scalar_lea.vmem %s4, %s409
        %v412 = vld [vmem:[%s390] sm:$0xff]
        %v413 = vld [vmem:[%s390 + $0x8] sm:$0xff]
        %v414 = vld [vmem:[%s410] sm:$0xf]
        %v415 = vld [vmem:[%s410 + $0x4] sm:$0xf]
        %v416 = vld [vmem:[%s405] sm:$0xff]
        %v417 = vld [vmem:[%s405 + $0x8] sm:$0xff]
        %v418 = vld [vmem:[%s395] sm:$0xff]
        %v419 = vld [vmem:[%s395 + $0x8] sm:$0xff]
        %v420 = vld [vmem:[%s395 + $0x10] sm:$0xff]
        %vm421 = vcmask 195584
        %v423 = vsel %vm421, %v416, 0
        %v426 = vsel %vm421, %v417, 0
        %428 = vmatprep.subr.mxu0 0.0
        %429 = vmatpush1.msra.mxu0 %v418
        %430 = vmatprep.subr.mxu0 0.0
        %431 = vmatpush1.msra.mxu0 %v419
        %432 = vmatprep.subr.mxu0 0.0
        %433 = vmatpush1.msra.mxu0 %v420
        %434 = vmatprep.subr.mxu0 0.0
        %435 = vmatpush1.msra.mxu0 0.0
        %436 = vmatprep.subr.mxu0 0.0
        %437 = vmatpush1.msra.mxu0 0.0
        %438 = vmatprep.subr.mxu0 0.0
        %439 = vmatpush1.msra.mxu0 0.0
        %440 = vmatprep.subr.mxu0 0.0
        %441 = vmatpush1.msra.mxu0 0.0
        %442 = vmatprep.subr.mxu0 0.0
        %443 = vmatpush1.msra.mxu0 0.0
        %444 = vmatprep.subr.mxu0 0.0
        %445 = vmatpush1.msra.mxu0 0.0
        %446 = vmatprep.subr.mxu0 0.0
        %447 = vmatpush1.msra.mxu0 0.0
        %448 = vmatprep.subr.mxu0 0.0
        %449 = vmatpush1.msra.mxu0 0.0
        %450 = vmatprep.subr.mxu0 0.0
        %451 = vmatpush1.msra.mxu0 0.0
        %452 = vmatprep.subr.mxu0 0.0
        %453 = vmatpush1.msra.mxu0 0.0
        %454 = vmatprep.subr.mxu0 0.0
        %455 = vmatpush1.msra.mxu0 0.0
        %456 = vmatprep.subr.mxu0 0.0
        %457 = vmatpush1.msra.mxu0 0.0
        %458 = vmatprep.subr.mxu0 0.0
        %459 = vmatpush1.msra.mxu0 0.0
        %460 = vmatprep.subr.mxu0 0.0
        %461 = vmatpush1.msra.mxu0 0.0
        %462 = vmatprep.subr.mxu0 0.0
        %463 = vmatpush1.msra.mxu0 0.0
        %464 = vmatprep.subr.mxu0 0.0
        %465 = vmatpush1.msra.mxu0 0.0
        %466 = vmatprep.subr.mxu0 0.0
        %467 = vmatpush1.msra.mxu0 0.0
        %468 = vmatprep.subr.mxu0 0.0
        %469 = vmatpush1.msra.mxu0 0.0
        %470 = vmatprep.subr.mxu0 0.0
        %471 = vmatpush1.msra.mxu0 0.0
        %472 = vmatprep.subr.mxu0 0.0
        %473 = vmatpush1.msra.mxu0 0.0
        %474 = vmatprep.subr.mxu0 0.0
        %475 = vmatpush1.msra.mxu0 0.0
        %476 = vmatprep.subr.mxu0 0.0
        %477 = vmatpush1.msra.mxu0 0.0
        %478 = vmatprep.subr.mxu0 0.0
        %479 = vmatpush1.msra.mxu0 0.0
        %480 = vmatprep.subr.mxu0 0.0
        %481 = vmatpush1.msra.mxu0 0.0
        %482 = vmatprep.subr.mxu0 0.0
        %483 = vmatpush1.msra.mxu0 0.0
        %484 = vmatprep.subr.mxu0 0.0
        %485 = vmatpush1.msra.mxu0 0.0
        %486 = vmatprep.subr.mxu0 0.0
        %487 = vmatpush1.msra.mxu0 0.0
        %488 = vmatprep.subr.mxu0 0.0
        %489 = vmatpush1.msra.mxu0 0.0
        %490 = vmatprep.subr.mxu0 0.0
        %491 = vmatpush1.msra.mxu0 0.0
        %492 = vmatprep.mubr.f32.mxu0 0.0
        %493 = vmatmul.mubr.f32.gmra.mrb[0].mxu0 %v423
        %v494 = vpop.f32.mrb[0].mxu0
        %v495 = vadd.f32 0.0, %v494
        %v496 = vpop.f32.mrb[0].mxu0
        %497 = vmatprep.mubr.f32.mxu0 0.0
        %498 = vmatmul.mubr.f32.gmra.mrb[0].mxu0 %v426
        %v499 = vpop.f32.mrb[0].mxu0
        %v500 = vadd.f32 0.0, %v499
        %v501 = vpop.f32.mrb[0].mxu0
        %502 = vdwg.mxu0
        %v503 = vpack.c.bf16 %v413, %v412
        %v506 = vunpack.c.l.b16 %v414
        %v507 = vunpack.c.l.b16 %v415
        %v508 = vpack.c.b16 %v507, %v506
        %vm509 = vcmask 130048
        %v511 = vsel %vm509, %v508, 0
        %513 = vmatprep.subr.bf16.mxu0 0
        %514 = vmatpush1.bf16.msra.mxu0 %v503
        %515 = vmatprep.subr.bf16.mxu0 0
        %516 = vmatpush1.bf16.msra.mxu0 0
        %517 = vmatprep.subr.bf16.mxu0 0
        %518 = vmatpush1.bf16.msra.mxu0 0
        %519 = vmatprep.subr.bf16.mxu0 0
        %520 = vmatpush1.bf16.msra.mxu0 0
        %521 = vmatprep.subr.bf16.mxu0 0
        %522 = vmatpush1.bf16.msra.mxu0 0
        %523 = vmatprep.subr.bf16.mxu0 0
        %524 = vmatpush1.bf16.msra.mxu0 0
        %525 = vmatprep.subr.bf16.mxu0 0
        %526 = vmatpush1.bf16.msra.mxu0 0
        %527 = vmatprep.subr.bf16.mxu0 0
        %528 = vmatpush1.bf16.msra.mxu0 0
        %529 = vmatprep.subr.bf16.mxu0 0
        %530 = vmatpush1.bf16.msra.mxu0 0
        %531 = vmatprep.subr.bf16.mxu0 0
        %532 = vmatpush1.bf16.msra.mxu0 0
        %533 = vmatprep.subr.bf16.mxu0 0
        %534 = vmatpush1.bf16.msra.mxu0 0
        %535 = vmatprep.subr.bf16.mxu0 0
        %536 = vmatpush1.bf16.msra.mxu0 0
        %537 = vmatprep.subr.bf16.mxu0 0
        %538 = vmatpush1.bf16.msra.mxu0 0
        %539 = vmatprep.subr.bf16.mxu0 0
        %540 = vmatpush1.bf16.msra.mxu0 0
        %541 = vmatprep.subr.bf16.mxu0 0
        %542 = vmatpush1.bf16.msra.mxu0 0
        %543 = vmatprep.subr.bf16.mxu0 0
        %544 = vmatpush1.bf16.msra.mxu0 0
        %545 = vmatprep.mubr.bf16.mxu0 0
        %546 = vmatmul.mubr.bf16.gmra.mrb[0].mxu0 %v511
        %v547 = vpop.f32.mrb[0].mxu0
        %v548 = vadd.f32 0.0, %v547
        %v549 = vpop.f32.mrb[0].mxu0
        %v550 = vpop.f32.mrb[0].mxu0
        %v551 = vadd.f32 0.0, %v550
        %v552 = vpop.f32.mrb[0].mxu0
        %553 = vdwg.mxu0
        %v554 = vpack.c.bf16 %v551, %v548
        %555 = vmatprep.subr.bf16.mxu0 0
        %556 = vmatpush1.bf16.msra.mxu0 %v554
        %557 = vmatprep.subr.bf16.mxu0 0
        %558 = vmatpush1.bf16.msra.mxu0 0
        %559 = vmatprep.subr.bf16.mxu0 0
        %560 = vmatpush1.bf16.msra.mxu0 0
        %561 = vmatprep.subr.bf16.mxu0 0
        %562 = vmatpush1.bf16.msra.mxu0 0
        %563 = vmatprep.subr.bf16.mxu0 0
        %564 = vmatpush1.bf16.msra.mxu0 0
        %565 = vmatprep.subr.bf16.mxu0 0
        %566 = vmatpush1.bf16.msra.mxu0 0
        %567 = vmatprep.subr.bf16.mxu0 0
        %568 = vmatpush1.bf16.msra.mxu0 0
        %569 = vmatprep.subr.bf16.mxu0 0
        %570 = vmatpush1.bf16.msra.mxu0 0
        %571 = vmatprep.subr.bf16.mxu0 0
        %572 = vmatpush1.bf16.msra.mxu0 0
        %573 = vmatprep.subr.bf16.mxu0 0
        %574 = vmatpush1.bf16.msra.mxu0 0
        %575 = vmatprep.subr.bf16.mxu0 0
        %576 = vmatpush1.bf16.msra.mxu0 0
        %577 = vmatprep.subr.bf16.mxu0 0
        %578 = vmatpush1.bf16.msra.mxu0 0
        %579 = vmatprep.subr.bf16.mxu0 0
        %580 = vmatpush1.bf16.msra.mxu0 0
        %581 = vmatprep.subr.bf16.mxu0 0
        %582 = vmatpush1.bf16.msra.mxu0 0
        %583 = vmatprep.subr.bf16.mxu0 0
        %584 = vmatpush1.bf16.msra.mxu0 0
        %585 = vmatprep.subr.bf16.mxu0 0
        %586 = vmatpush1.bf16.msra.mxu0 0
        %587 = vmatprep.mubr.bf16.mxu0 0
        %588 = vmatmul.mubr.bf16.gmra.mrb[0].mxu0 %v511
        %v589 = vpop.f32.mrb[0].mxu0
        %v590 = vadd.f32 0.0, %v589
        %v591 = vpop.f32.mrb[0].mxu0
        %v592 = vpop.f32.mrb[0].mxu0
        %v593 = vadd.f32 0.0, %v592
        %v594 = vpop.f32.mrb[0].mxu0
        %595 = vdwg.mxu0
        %v596 = vpack.c.bf16 %v593, %v590
        %597 = vmatprep.subr.bf16.mxu0 0
        %598 = vmatpush1.bf16.msra.mxu0 %v596
        %599 = vmatprep.subr.bf16.mxu0 0
        %600 = vmatpush1.bf16.msra.mxu0 0
        %601 = vmatprep.subr.bf16.mxu0 0
        %602 = vmatpush1.bf16.msra.mxu0 0
        %603 = vmatprep.subr.bf16.mxu0 0
        %604 = vmatpush1.bf16.msra.mxu0 0
        %605 = vmatprep.subr.bf16.mxu0 0
        %606 = vmatpush1.bf16.msra.mxu0 0
        %607 = vmatprep.subr.bf16.mxu0 0
        %608 = vmatpush1.bf16.msra.mxu0 0
        %609 = vmatprep.subr.bf16.mxu0 0
        %610 = vmatpush1.bf16.msra.mxu0 0
        %611 = vmatprep.subr.bf16.mxu0 0
        %612 = vmatpush1.bf16.msra.mxu0 0
        %613 = vmatprep.subr.bf16.mxu0 0
        %614 = vmatpush1.bf16.msra.mxu0 0
        %615 = vmatprep.subr.bf16.mxu0 0
        %616 = vmatpush1.bf16.msra.mxu0 0
        %617 = vmatprep.subr.bf16.mxu0 0
        %618 = vmatpush1.bf16.msra.mxu0 0
        %619 = vmatprep.subr.bf16.mxu0 0
        %620 = vmatpush1.bf16.msra.mxu0 0
        %621 = vmatprep.subr.bf16.mxu0 0
        %622 = vmatpush1.bf16.msra.mxu0 0
        %623 = vmatprep.subr.bf16.mxu0 0
        %624 = vmatpush1.bf16.msra.mxu0 0
        %625 = vmatprep.subr.bf16.mxu0 0
        %626 = vmatpush1.bf16.msra.mxu0 0
        %627 = vmatprep.subr.bf16.mxu0 0
        %628 = vmatpush1.bf16.msra.mxu0 0
        %629 = vmatprep.mubr.bf16.mxu0 0
        %630 = vmatmul.mubr.bf16.gmra.mrb[0].mxu0 %v511
        %v631 = vpop.f32.mrb[0].mxu0
        %v632 = vadd.f32 0.0, %v631
        %v633 = vpop.f32.mrb[0].mxu0
        %v634 = vpop.f32.mrb[0].mxu0
        %v635 = vadd.f32 0.0, %v634
        %v636 = vpop.f32.mrb[0].mxu0
        %637 = vdwg.mxu0
        %v638 = vpack.c.bf16 %v635, %v632
        %639 = vmatprep.subr.bf16.mxu0 0
        %640 = vmatpush1.bf16.msra.mxu0 %v638
        %641 = vmatprep.subr.bf16.mxu0 0
        %642 = vmatpush1.bf16.msra.mxu0 0
        %643 = vmatprep.subr.bf16.mxu0 0
        %644 = vmatpush1.bf16.msra.mxu0 0
        %645 = vmatprep.subr.bf16.mxu0 0
        %646 = vmatpush1.bf16.msra.mxu0 0
        %647 = vmatprep.subr.bf16.mxu0 0
        %648 = vmatpush1.bf16.msra.mxu0 0
        %649 = vmatprep.subr.bf16.mxu0 0
        %650 = vmatpush1.bf16.msra.mxu0 0
        %651 = vmatprep.subr.bf16.mxu0 0
        %652 = vmatpush1.bf16.msra.mxu0 0
        %653 = vmatprep.subr.bf16.mxu0 0
        %654 = vmatpush1.bf16.msra.mxu0 0
        %655 = vmatprep.subr.bf16.mxu0 0
        %656 = vmatpush1.bf16.msra.mxu0 0
        %657 = vmatprep.subr.bf16.mxu0 0
        %658 = vmatpush1.bf16.msra.mxu0 0
        %659 = vmatprep.subr.bf16.mxu0 0
        %660 = vmatpush1.bf16.msra.mxu0 0
        %661 = vmatprep.subr.bf16.mxu0 0
        %662 = vmatpush1.bf16.msra.mxu0 0
        %663 = vmatprep.subr.bf16.mxu0 0
        %664 = vmatpush1.bf16.msra.mxu0 0
        %665 = vmatprep.subr.bf16.mxu0 0
        %666 = vmatpush1.bf16.msra.mxu0 0
        %667 = vmatprep.subr.bf16.mxu0 0
        %668 = vmatpush1.bf16.msra.mxu0 0
        %669 = vmatprep.subr.bf16.mxu0 0
        %670 = vmatpush1.bf16.msra.mxu0 0
        %671 = vmatprep.mubr.bf16.mxu0 0
        %672 = vmatmul.mubr.bf16.gmra.mrb[0].mxu0 %v511
        %v673 = vpop.f32.mrb[0].mxu0
        %v674 = vadd.f32 0.0, %v673
        %v675 = vpop.f32.mrb[0].mxu0
        %v676 = vpop.f32.mrb[0].mxu0
        %v677 = vadd.f32 0.0, %v676
        %v678 = vpop.f32.mrb[0].mxu0
        %679 = vdwg.mxu0
        %v680 = vld [vmem:[%s400] sm:$0xff]
        %v681 = vld [vmem:[%s400 + $0x8] sm:$0xff]
        %683 = vset.pattern.permute.xlu0 0
        %684 = vperm.xlu0 %683, %v680
        %v685 = vpop.permute.xlu0 %684
        %688 = vset.pattern.permute.xlu0 0
        %689 = vperm.xlu0 %688, %v681
        %v690 = vpop.permute.xlu0 %689
        %v692 = vmul.f32 %v685, %v412
        %v693 = vmul.f32 %v690, %v413
        %696 = vrot.lane.b32.xlu0 %v692, 8
        %v697 = vpop.permute.xlu0 %696
        %698 = vrot.lane.b32.xlu0 %v693, 8
        %v699 = vpop.permute.xlu0 %698
        %704 = vrot.lane.b32.xlu0 %v548, 16
        %v705 = vpop.permute.xlu0 %704
        %706 = vrot.lane.b32.xlu0 %v551, 16
        %v707 = vpop.permute.xlu0 %706
        %712 = vrot.lane.b32.xlu0 %v590, 24
        %v713 = vpop.permute.xlu0 %712
        %714 = vrot.lane.b32.xlu0 %v593, 24
        %v715 = vpop.permute.xlu0 %714
        %720 = vrot.lane.b32.xlu0 %v674, 32
        %v721 = vpop.permute.xlu0 %720
        %722 = vrot.lane.b32.xlu0 %v677, 32
        %v723 = vpop.permute.xlu0 %722
        %728 = vrot.lane.b32.xlu0 %v495, 40
        %v729 = vpop.permute.xlu0 %728
        %730 = vrot.lane.b32.xlu0 %v500, 40
        %v731 = vpop.permute.xlu0 %730
        %vm734 = vcmask 64512
        %v735 = vsel %vm734, %v412, %v697
        %v736 = vsel %vm734, %v413, %v699
        %v737 = vsel %vm509, %v735, %v705
        %v738 = vsel %vm509, %v736, %v707
        %v739 = vsel %vm421, %v737, %v713
        %v740 = vsel %vm421, %v738, %v715
        %vm741 = vcmask 261120
        %v742 = vsel %vm741, %v739, %v721
        %v743 = vsel %vm741, %v740, %v723
        %vm744 = vcmask 326656
        %v745 = vsel %vm744, %v742, %v729
        %v746 = vsel %vm744, %v743, %v731
        %v747 = vld [vmem:[%s5] sm:$0xff]
        %v748 = vld [vmem:[%s5 + $0x8] sm:$0xff]
        %v749 = vld [vmem:[%s5 + $0x10] sm:$0xff]
        %v750 = vld [vmem:[%s5 + $0x18] sm:$0xff]
        %v751 = vld [vmem:[%s5 + $0x20] sm:$0xff]
        %v752 = vld [vmem:[%s5 + $0x28] sm:$0xff]
        %v753 = vld [vmem:[%s6] sm:$0x1]
        %v755 = vlaneseq
        %v756 = vshrl.u32 %v755, 7
        %v757 = vsub.s32 0, %v756
        %v758 = vrot.slane %v753, %v757
        %vm760 = vcmask 392192
        %v762 = vsel %vm760, %v745, 0
        %v765 = vsel %vm760, %v746, 0
        %767 = vmatprep.subr.mxu0 0.0
        %768 = vmatpush1.msra.mxu0 %v747
        %769 = vmatprep.subr.mxu0 0.0
        %770 = vmatpush1.msra.mxu0 %v748
        %771 = vmatprep.subr.mxu0 0.0
        %772 = vmatpush1.msra.mxu0 %v749
        %773 = vmatprep.subr.mxu0 0.0
        %774 = vmatpush1.msra.mxu0 %v750
        %775 = vmatprep.subr.mxu0 0.0
        %776 = vmatpush1.msra.mxu0 %v751
        %777 = vmatprep.subr.mxu0 0.0
        %778 = vmatpush1.msra.mxu0 %v752
        %779 = vmatprep.subr.mxu0 0.0
        %780 = vmatpush1.msra.mxu0 0.0
        %781 = vmatprep.subr.mxu0 0.0
        %782 = vmatpush1.msra.mxu0 0.0
        %783 = vmatprep.subr.mxu0 0.0
        %784 = vmatpush1.msra.mxu0 0.0
        %785 = vmatprep.subr.mxu0 0.0
        %786 = vmatpush1.msra.mxu0 0.0
        %787 = vmatprep.subr.mxu0 0.0
        %788 = vmatpush1.msra.mxu0 0.0
        %789 = vmatprep.subr.mxu0 0.0
        %790 = vmatpush1.msra.mxu0 0.0
        %791 = vmatprep.subr.mxu0 0.0
        %792 = vmatpush1.msra.mxu0 0.0
        %793 = vmatprep.subr.mxu0 0.0
        %794 = vmatpush1.msra.mxu0 0.0
        %795 = vmatprep.subr.mxu0 0.0
        %796 = vmatpush1.msra.mxu0 0.0
        %797 = vmatprep.subr.mxu0 0.0
        %798 = vmatpush1.msra.mxu0 0.0
        %799 = vmatprep.subr.mxu0 0.0
        %800 = vmatpush1.msra.mxu0 0.0
        %801 = vmatprep.subr.mxu0 0.0
        %802 = vmatpush1.msra.mxu0 0.0
        %803 = vmatprep.subr.mxu0 0.0
        %804 = vmatpush1.msra.mxu0 0.0
        %805 = vmatprep.subr.mxu0 0.0
        %806 = vmatpush1.msra.mxu0 0.0
        %807 = vmatprep.subr.mxu0 0.0
        %808 = vmatpush1.msra.mxu0 0.0
        %809 = vmatprep.subr.mxu0 0.0
        %810 = vmatpush1.msra.mxu0 0.0
        %811 = vmatprep.subr.mxu0 0.0
        %812 = vmatpush1.msra.mxu0 0.0
        %813 = vmatprep.subr.mxu0 0.0
        %814 = vmatpush1.msra.mxu0 0.0
        %815 = vmatprep.subr.mxu0 0.0
        %816 = vmatpush1.msra.mxu0 0.0
        %817 = vmatprep.subr.mxu0 0.0
        %818 = vmatpush1.msra.mxu0 0.0
        %819 = vmatprep.subr.mxu0 0.0
        %820 = vmatpush1.msra.mxu0 0.0
        %821 = vmatprep.subr.mxu0 0.0
        %822 = vmatpush1.msra.mxu0 0.0
        %823 = vmatprep.subr.mxu0 0.0
        %824 = vmatpush1.msra.mxu0 0.0
        %825 = vmatprep.subr.mxu0 0.0
        %826 = vmatpush1.msra.mxu0 0.0
        %827 = vmatprep.subr.mxu0 0.0
        %828 = vmatpush1.msra.mxu0 0.0
        %829 = vmatprep.subr.mxu0 0.0
        %830 = vmatpush1.msra.mxu0 0.0
        %831 = vmatprep.mubr.f32.mxu0 0.0
        %832 = vmatmul.mubr.f32.gmra.mrb[0].mxu0 %v762
        %v833 = vpop.f32.mrb[0].mxu0
        %v834 = vadd.f32 %v758, %v833
        %v835 = vpop.f32.mrb[0].mxu0
        %836 = vmatprep.mubr.f32.mxu0 0.0
        %837 = vmatmul.mubr.f32.gmra.mrb[0].mxu0 %v765
        %v838 = vpop.f32.mrb[0].mxu0
        %v839 = vadd.f32 %v758, %v838
        %v840 = vpop.f32.mrb[0].mxu0
        %841 = vdwg.mxu0
        %v842 = vlaneseq
        %v843 = vand.u32 %v842, 127
        %vm844 = vcmp.ge.s32.totalorder %v843, 8
        %v845 = vmax.f32 %v834, 0.0
        %v846 = vmax.f32 %v839, 0.0
        %v847 = vsel %vm844, %v845, %v834
        %v848 = vsel %vm844, %v846, %v839
        %v849 = vsel %vm509, %v847, 0.0
        %v850 = vsel %vm509, %v848, 0.0
        %v851 = vadd.f32 %v849, %v850
        %v852 = vrot.slane %v851, 4
        %v853 = vadd.f32 %v851, %v852
        %v854 = vrot.slane %v853, 2
        %v855 = vadd.f32 %v853, %v854
        %v856 = vrot.slane %v855, 1
        %v857 = vadd.f32 %v855, %v856
        %v858 = vrcp.pop 16.0
        %v859 = vmul.f32 %v857, %v858
        %v860 = vsub.f32 %v847, %v859
        %v861 = vsub.f32 %v848, %v859
        %v862 = vmul.f32 %v860, %v860
        %v863 = vmul.f32 %v861, %v861
        %v864 = vsel %vm509, %v862, 0.0
        %v865 = vsel %vm509, %v863, 0.0
        %v866 = vadd.f32 %v864, %v865
        %v867 = vrot.slane %v866, 4
        %v868 = vadd.f32 %v866, %v867
        %v869 = vrot.slane %v868, 2
        %v870 = vadd.f32 %v868, %v869
        %v871 = vrot.slane %v870, 1
        %v872 = vadd.f32 %v870, %v871
        %v873 = vmul.f32 %v872, %v858
        %v874 = vadd.f32 %v873, 1e-05
        %v875 = vrsqrt.pop %v874
        %v876 = vmul.f32 %v860, %v875
        %v877 = vmul.f32 %v861, %v875
        %v878 = vld [vmem:[%s7] sm:$0x1]
        %v880 = vlaneseq
        %v881 = vshrl.u32 %v880, 7
        %v882 = vsub.s32 0, %v881
        %v883 = vrot.slane %v878, %v882
        %v885 = vmul.f32 %v876, %v883
        %v886 = vmul.f32 %v877, %v883
        %v887 = vld [vmem:[%s8] sm:$0x1]
        %v889 = vlaneseq
        %v890 = vshrl.u32 %v889, 7
        %v891 = vsub.s32 0, %v890
        %v892 = vrot.slane %v887, %v891
        %v894 = vadd.f32 %v885, %v892
        %v895 = vadd.f32 %v886, %v892
        %896 = vst.msk [vmem:[%s385] sm:$0xff] %vm509, %v894
        %897 = vst.msk [vmem:[%s385 + $0x8] sm:$0xff] %vm509, %v895
        %s898 = sand.u32 %s245, 1
        %s899 = scalar_lea.sflag [#allocation3], %s898
        %s900 = sand.u32 %s245, 1
        %s901 = smul.addr %s900, 16
        %s902 = scalar_lea.vmem [#allocation2], %s901
        // Predicated region
        $region57: #{tpu_custom_call.1} parent=55 // pred_check
          %p903 = pneg %p255
        $region58: #{tpu_custom_call.1} parent=55 // pred_check_branch
          %905 = sbr.rel (%p903) target = $region60
        $region59: #{tpu_custom_call.1} parent=55 // pred_region
          %s907 = ssub.s32 256, 256
          %908 = vsyncadd %s899, %s907
          %s909 = smul.addr %s23, 2
          %s910 = smul.addr %s909, 128
          %s911 = scalar_lea.hbm %s9, %s910
          %s912 = sshll.u32 %s902, 4
          %s913 = int_to_ptr.vmem [resolvable:$true] %s912
          %918 = dma.vmem_to_hbm [thread:$0]  %s913, 256, %s911, %s899, 128, 128, 8
        $region60: #{tpu_custom_call.1} parent=55 // pred_fallthru
          _
      $region56: #{tpu_custom_call.1} parent=5 // pred_fallthru
        _
      %p919 = scmp.le.s32.totalorder 2, %s18
      // Predicated region
      $region61: #{tpu_custom_call.1} parent=5 // pred_check
        %p920 = pneg %p919
      $region62: #{tpu_custom_call.1} parent=5 // pred_check_branch
        %922 = sbr.rel (%p920) target = $region64
      $region63: #{tpu_custom_call.1} parent=5 // pred_region
        %s923 = ssub.s32 %s18, 2
        // Predicated region
        $region65: #{tpu_custom_call.1} parent=63 // pred_check
          %p924 = pneg %p261
        $region66: #{tpu_custom_call.1} parent=63 // pred_check_branch
          %926 = sbr.rel (%p924) target = $region68
        $region67: #{tpu_custom_call.1} parent=63 // pred_region
          %s927 = sand.u32 %s246, 1
          %s928 = scalar_lea.sflag [#allocation3], %s927
          %s929 = sand.u32 %s246, 1
          %s930 = smul.addr %s929, 16
          %s931 = scalar_lea.vmem [#allocation2], %s930
          %932 = dma.done %s928, 256
        $region68: #{tpu_custom_call.1} parent=63 // pred_fallthru
          _
      $region64: #{tpu_custom_call.1} parent=5 // pred_fallthru
        _
    $region6: #{tpu_custom_call.1} parent=1 // loop_footer
      %s22 = sadd.s32 1, %s18
    $region7: #{tpu_custom_call.1} parent=1 // loop_footer_branch
      %17 = sbr.rel target = $region3
    $region8: #{tpu_custom_call.1} parent=1 // loop_exit
      _
    %933 = vsyncpa [#allocation3], 1
    %s934 = scalar_lea.sflag [#allocation3], 1
    %935 = vsyncpa %s934, 1

</llo_original>
